<compile_context>
chip_gen: v5e
topology: v5e:2x2
jax: 0.10.0
libtpu: 0.0.40
codegen_flags: <defaults>
</compile_context>

<pallas_src>
from functools import partial

import jax
import jax.numpy as jnp
from jax import lax
from jax.experimental import pallas as pl
from jax.experimental.pallas import tpu as pltpu

_LANES = 128
_SUBLANES = 8


def _hash_u32(x):
    """triple32: high-avalanche uint32 -> uint32 hash (VPU-only ops)."""
    x = x ^ (x >> 17)
    x = x * jnp.uint32(0xED5AD4BB)
    x = x ^ (x >> 11)
    x = x * jnp.uint32(0xAC4C1B51)
    x = x ^ (x >> 15)
    x = x * jnp.uint32(0x31848BAB)
    x = x ^ (x >> 14)
    return x


def _uniform_from_bits(bits_u32):
    """uint32 bits -> f32 uniform in (-1, 1), never exactly +/-1 (mantissa trick)."""
    m = lax.bitcast_convert_type(
        (bits_u32 >> 9) | jnp.uint32(0x3F800000), jnp.float32)  # [1, 2)
    return 2.0 * m - (3.0 - 2.0 ** -23)


def _erfinv_f32(x):
    """Giles' single-precision erfinv approximation, valid for |x| < 1."""
    w = -jnp.log((1.0 - x) * (1.0 + x))          # w >= 0, finite since |x| < 1
    # Central branch (w < 5).
    wc = w - 2.5
    p1 = jnp.float32(2.81022636e-08)
    for c in (3.43273939e-07, -3.5233877e-06, -4.39150654e-06, 0.00021858087,
              -0.00125372503, -0.00417768164, 0.246640727, 1.50140941):
        p1 = c + p1 * wc
    # Tail branch (w >= 5).
    wt = jnp.sqrt(w) - 3.0
    p2 = jnp.float32(-0.000200214257)
    for c in (0.000100950558, 0.00134934322, -0.00367342844, 0.00573950773,
              -0.0076224613, 0.00943887047, 1.00167406, 2.83297682):
        p2 = c + p2 * wt
    return jnp.where(w < 5.0, p1, p2) * x


def _gaussian_noise_kernel(key_ref, x_ref, o_ref, *, mean, stddev):
    tr, tc = x_ref.shape
    i = pl.program_id(0)

    # Unique global linear index per element; includes the grid position so
    # every tile draws independent noise.
    row = lax.broadcasted_iota(jnp.int32, (tr, tc), 0)
    col = lax.broadcasted_iota(jnp.int32, (tr, tc), 1)
    lin = (i * tr + row) * tc + col                     # int32
    seeded = lin ^ key_ref[0]                           # mix in the seed (int32)
    ctr = lax.bitcast_convert_type(seeded, jnp.uint32)  # reinterpret for hashing

    bits = _hash_u32(ctr)
    u = _uniform_from_bits(bits)                        # (-1, 1)
    z = 1.4142135623730951 * _erfinv_f32(u)             # ~N(0, 1)
    noise = jnp.float32(mean) + jnp.float32(stddev) * z

    # Accumulate in f32, cast once to the output dtype.
    o_ref[...] = (x_ref[...].astype(jnp.float32) + noise).astype(o_ref.dtype)


def gaussian_noise(x, seed, stddev, mean=0.0, training=True, *, block_rows=2048):
    """Additive Gaussian noise layer (forward). Identity when training=False."""
    if not training:
        return x

    orig_shape = x.shape
    orig_dtype = x.dtype

    flat = x.reshape(-1)
    n = flat.shape[0]
    # Pad only when needed so the slab is (rows, 128) with rows a multiple of 8.
    pad = (-n) % (_SUBLANES * _LANES)
    if pad:
        flat = jnp.pad(flat, (0, pad))
    x2d = flat.reshape(-1, _LANES)
    rows = x2d.shape[0]

    # ~1 MiB f32 blocks: big enough to amortize per-step overhead, small enough
    # to double-buffer (in + out) under every generation's scoped VMEM limit.
    tr = min(block_rows, rows)                 # rows (and hence tr) multiple of 8
    grid = (pl.cdiv(rows, tr),)

    # Host-side mixing of the user seed into a 32-bit key (wrapped to int32).
    key = (int(seed) * 0x9E3779B1 + 0x7F4A7C15) & 0xFFFFFFFF
    if key >= 1 << 31:
        key -= 1 << 32
    key_arr = jnp.asarray([key], dtype=jnp.int32)

    out2d = pl.pallas_call(
        partial(_gaussian_noise_kernel, mean=float(mean), stddev=float(stddev)),
        out_shape=jax.ShapeDtypeStruct((rows, _LANES), orig_dtype),
        grid=grid,
        in_specs=[
            pl.BlockSpec(memory_space=pltpu.MemorySpace.SMEM),   # seed key scalar
            pl.BlockSpec((tr, _LANES), lambda i: (i, 0)),        # x tile
        ],
        out_specs=pl.BlockSpec((tr, _LANES), lambda i: (i, 0)),
        compiler_params=pltpu.CompilerParams(
            dimension_semantics=("parallel",)),
    )(key_arr, x2d)

    if pad:
        return out2d.reshape(-1)[:n].reshape(orig_shape)
    return out2d.reshape(orig_shape)


if __name__ == "__main__":
    key = jax.random.PRNGKey(0)
    # Small NCHW input: batch=2, channels=4, spatial=16x16.
    x = jax.random.normal(key, (2, 4, 16, 16), dtype=jnp.float32)

    stddev = 0.1
    mean = 0.0

    # Training mode: x + N(mean, stddev) noise.
    y_train = gaussian_noise(x, seed=1234, stddev=stddev, mean=mean, training=True)
    y_train = jax.block_until_ready(y_train)

    # Eval mode: identity.
    y_eval = gaussian_noise(x, seed=1234, stddev=stddev, mean=mean, training=False)
    y_eval = jax.block_until_ready(y_eval)

    assert y_train.shape == x.shape and y_train.dtype == x.dtype
    assert bool(jnp.array_equal(y_eval, x))

    # Deterministic for a fixed seed.
    y_again = jax.block_until_ready(
        gaussian_noise(x, seed=1234, stddev=stddev, mean=mean, training=True))
    assert bool(jnp.array_equal(y_train, y_again))

    # Sanity check that the added noise has roughly the requested statistics.
    noise = (y_train - x).astype(jnp.float32)
    noise_mean = float(jnp.mean(noise))
    noise_std = float(jnp.std(noise))
    assert abs(noise_mean - mean) < 0.05, noise_mean
    assert abs(noise_std - stddev) < 0.05, noise_std

    print("KERNEL_OK")
</pallas_src>

<mosaic_0001>
module attributes {stable_mosaic.version = 11 : i64} {
  func.func @_gaussian_noise_kernel(%arg0: i32, %arg1: memref<1xi32, #tpu.memory_space<smem>>, %arg2: memref<16x128xf32, #tpu.memory_space<vmem>>, %arg3: memref<16x128xf32, #tpu.memory_space<vmem>>) attributes {dimension_semantics = [#tpu.dimension_semantics<parallel>], iteration_bounds = array<i64: 1>, scalar_prefetch = 0 : i64, scratch_operands = 0 : i64, tpu.core_type = #tpu.core_type<tc>, window_params = [{transform_indices = @transform_0, window_bounds = array<i64: 1>}, {transform_indices = @transform_1, window_bounds = array<i64: 16, 128>}, {transform_indices = @transform_2, window_bounds = array<i64: 16, 128>}]} {
    %0 = tpu.iota {dimensions = array<i32: 0>} : vector<16x128xi32>
    %1 = tpu.iota {dimensions = array<i32: 1>} : vector<16x128xi32>
    %c16_i32 = arith.constant 16 : i32
    %2 = arith.muli %arg0, %c16_i32 : i32
    %3 = vector.broadcast %2 : i32 to vector<16x128xi32>
    %4 = arith.addi %3, %0 : vector<16x128xi32>
    %c128_i32 = arith.constant 128 : i32
    %5 = vector.broadcast %c128_i32 : i32 to vector<16x128xi32>
    %6 = arith.muli %4, %5 : vector<16x128xi32>
    %7 = arith.addi %6, %1 : vector<16x128xi32>
    %c0 = arith.constant 0 : index
    %8 = memref.load %arg1[%c0] : memref<1xi32, #tpu.memory_space<smem>>
    %9 = vector.broadcast %8 : i32 to vector<16x128xi32>
    %10 = arith.xori %7, %9 : vector<16x128xi32>
    %11 = tpu.bitcast %10 : vector<16x128xi32> -> vector<16x128xi32>
    %c17_i32 = arith.constant 17 : i32
    %12 = vector.broadcast %c17_i32 : i32 to vector<16x128xi32>
    %13 = arith.shrui %11, %12 : vector<16x128xi32>
    %14 = arith.xori %11, %13 : vector<16x128xi32>
    %c-312814405_i32 = arith.constant -312814405 : i32
    %15 = vector.broadcast %c-312814405_i32 : i32 to vector<16x128xi32>
    %16 = arith.muli %14, %15 : vector<16x128xi32>
    %c11_i32 = arith.constant 11 : i32
    %17 = vector.broadcast %c11_i32 : i32 to vector<16x128xi32>
    %18 = arith.shrui %16, %17 : vector<16x128xi32>
    %19 = arith.xori %16, %18 : vector<16x128xi32>
    %c-1404298415_i32 = arith.constant -1404298415 : i32
    %20 = vector.broadcast %c-1404298415_i32 : i32 to vector<16x128xi32>
    %21 = arith.muli %19, %20 : vector<16x128xi32>
    %c15_i32 = arith.constant 15 : i32
    %22 = vector.broadcast %c15_i32 : i32 to vector<16x128xi32>
    %23 = arith.shrui %21, %22 : vector<16x128xi32>
    %24 = arith.xori %21, %23 : vector<16x128xi32>
    %c830770091_i32 = arith.constant 830770091 : i32
    %25 = vector.broadcast %c830770091_i32 : i32 to vector<16x128xi32>
    %26 = arith.muli %24, %25 : vector<16x128xi32>
    %c14_i32 = arith.constant 14 : i32
    %27 = vector.broadcast %c14_i32 : i32 to vector<16x128xi32>
    %28 = arith.shrui %26, %27 : vector<16x128xi32>
    %29 = arith.xori %26, %28 : vector<16x128xi32>
    %c9_i32 = arith.constant 9 : i32
    %30 = vector.broadcast %c9_i32 : i32 to vector<16x128xi32>
    %31 = arith.shrui %29, %30 : vector<16x128xi32>
    %c1065353216_i32 = arith.constant 1065353216 : i32
    %32 = vector.broadcast %c1065353216_i32 : i32 to vector<16x128xi32>
    %33 = arith.ori %31, %32 : vector<16x128xi32>
    %34 = tpu.bitcast %33 : vector<16x128xi32> -> vector<16x128xf32>
    %cst = arith.constant 2.000000e+00 : f32
    %35 = vector.broadcast %cst : f32 to vector<16x128xf32>
    %36 = arith.mulf %35, %34 : vector<16x128xf32>
    %cst_0 = arith.constant 3.000000e+00 : f32
    %37 = vector.broadcast %cst_0 : f32 to vector<16x128xf32>
    %38 = arith.subf %36, %37 : vector<16x128xf32>
    %cst_1 = arith.constant 1.000000e+00 : f32
    %39 = vector.broadcast %cst_1 : f32 to vector<16x128xf32>
    %40 = arith.subf %39, %38 : vector<16x128xf32>
    %cst_2 = arith.constant 1.000000e+00 : f32
    %41 = vector.broadcast %cst_2 : f32 to vector<16x128xf32>
    %42 = arith.addf %41, %38 : vector<16x128xf32>
    %43 = arith.mulf %40, %42 : vector<16x128xf32>
    %44 = math.log %43 : vector<16x128xf32>
    %cst_3 = arith.constant 0.000000e+00 : f32
    %45 = vector.broadcast %cst_3 : f32 to vector<16x128xf32>
    %46 = arith.subf %45, %44 : vector<16x128xf32>
    %cst_4 = arith.constant 2.500000e+00 : f32
    %47 = vector.broadcast %cst_4 : f32 to vector<16x128xf32>
    %48 = arith.subf %46, %47 : vector<16x128xf32>
    %cst_5 = arith.constant 2.81022636E-8 : f32
    %49 = vector.broadcast %cst_5 : f32 to vector<16x128xf32>
    %50 = arith.mulf %49, %48 : vector<16x128xf32>
    %cst_6 = arith.constant 3.43273939E-7 : f32
    %51 = vector.broadcast %cst_6 : f32 to vector<16x128xf32>
    %52 = arith.addf %51, %50 : vector<16x128xf32>
    %53 = arith.mulf %52, %48 : vector<16x128xf32>
    %cst_7 = arith.constant -3.5233877E-6 : f32
    %54 = vector.broadcast %cst_7 : f32 to vector<16x128xf32>
    %55 = arith.addf %54, %53 : vector<16x128xf32>
    %56 = arith.mulf %55, %48 : vector<16x128xf32>
    %cst_8 = arith.constant -4.39150654E-6 : f32
    %57 = vector.broadcast %cst_8 : f32 to vector<16x128xf32>
    %58 = arith.addf %57, %56 : vector<16x128xf32>
    %59 = arith.mulf %58, %48 : vector<16x128xf32>
    %cst_9 = arith.constant 2.1858087E-4 : f32
    %60 = vector.broadcast %cst_9 : f32 to vector<16x128xf32>
    %61 = arith.addf %60, %59 : vector<16x128xf32>
    %62 = arith.mulf %61, %48 : vector<16x128xf32>
    %cst_10 = arith.constant -0.00125372503 : f32
    %63 = vector.broadcast %cst_10 : f32 to vector<16x128xf32>
    %64 = arith.addf %63, %62 : vector<16x128xf32>
    %65 = arith.mulf %64, %48 : vector<16x128xf32>
    %cst_11 = arith.constant -0.00417768164 : f32
    %66 = vector.broadcast %cst_11 : f32 to vector<16x128xf32>
    %67 = arith.addf %66, %65 : vector<16x128xf32>
    %68 = arith.mulf %67, %48 : vector<16x128xf32>
    %cst_12 = arith.constant 0.246640727 : f32
    %69 = vector.broadcast %cst_12 : f32 to vector<16x128xf32>
    %70 = arith.addf %69, %68 : vector<16x128xf32>
    %71 = arith.mulf %70, %48 : vector<16x128xf32>
    %cst_13 = arith.constant 1.50140941 : f32
    %72 = vector.broadcast %cst_13 : f32 to vector<16x128xf32>
    %73 = arith.addf %72, %71 : vector<16x128xf32>
    %74 = math.sqrt %46 : vector<16x128xf32>
    %cst_14 = arith.constant 3.000000e+00 : f32
    %75 = vector.broadcast %cst_14 : f32 to vector<16x128xf32>
    %76 = arith.subf %74, %75 : vector<16x128xf32>
    %cst_15 = arith.constant -2.00214257E-4 : f32
    %77 = vector.broadcast %cst_15 : f32 to vector<16x128xf32>
    %78 = arith.mulf %77, %76 : vector<16x128xf32>
    %cst_16 = arith.constant 1.00950558E-4 : f32
    %79 = vector.broadcast %cst_16 : f32 to vector<16x128xf32>
    %80 = arith.addf %79, %78 : vector<16x128xf32>
    %81 = arith.mulf %80, %76 : vector<16x128xf32>
    %cst_17 = arith.constant 0.00134934322 : f32
    %82 = vector.broadcast %cst_17 : f32 to vector<16x128xf32>
    %83 = arith.addf %82, %81 : vector<16x128xf32>
    %84 = arith.mulf %83, %76 : vector<16x128xf32>
    %cst_18 = arith.constant -0.00367342844 : f32
    %85 = vector.broadcast %cst_18 : f32 to vector<16x128xf32>
    %86 = arith.addf %85, %84 : vector<16x128xf32>
    %87 = arith.mulf %86, %76 : vector<16x128xf32>
    %cst_19 = arith.constant 0.00573950773 : f32
    %88 = vector.broadcast %cst_19 : f32 to vector<16x128xf32>
    %89 = arith.addf %88, %87 : vector<16x128xf32>
    %90 = arith.mulf %89, %76 : vector<16x128xf32>
    %cst_20 = arith.constant -0.0076224613 : f32
    %91 = vector.broadcast %cst_20 : f32 to vector<16x128xf32>
    %92 = arith.addf %91, %90 : vector<16x128xf32>
    %93 = arith.mulf %92, %76 : vector<16x128xf32>
    %cst_21 = arith.constant 0.00943887047 : f32
    %94 = vector.broadcast %cst_21 : f32 to vector<16x128xf32>
    %95 = arith.addf %94, %93 : vector<16x128xf32>
    %96 = arith.mulf %95, %76 : vector<16x128xf32>
    %cst_22 = arith.constant 1.00167406 : f32
    %97 = vector.broadcast %cst_22 : f32 to vector<16x128xf32>
    %98 = arith.addf %97, %96 : vector<16x128xf32>
    %99 = arith.mulf %98, %76 : vector<16x128xf32>
    %cst_23 = arith.constant 2.83297682 : f32
    %100 = vector.broadcast %cst_23 : f32 to vector<16x128xf32>
    %101 = arith.addf %100, %99 : vector<16x128xf32>
    %cst_24 = arith.constant 5.000000e+00 : f32
    %102 = vector.broadcast %cst_24 : f32 to vector<16x128xf32>
    %103 = arith.cmpf olt, %46, %102 : vector<16x128xf32>
    %104 = arith.select %103, %73, %101 : vector<16x128xi1>, vector<16x128xf32>
    %105 = arith.mulf %104, %38 : vector<16x128xf32>
    %cst_25 = arith.constant 1.41421354 : f32
    %106 = vector.broadcast %cst_25 : f32 to vector<16x128xf32>
    %107 = arith.mulf %106, %105 : vector<16x128xf32>
    %cst_26 = arith.constant 1.000000e-01 : f32
    %108 = vector.broadcast %cst_26 : f32 to vector<16x128xf32>
    %109 = arith.mulf %108, %107 : vector<16x128xf32>
    %cst_27 = arith.constant 0.000000e+00 : f32
    %110 = vector.broadcast %cst_27 : f32 to vector<16x128xf32>
    %111 = arith.addf %110, %109 : vector<16x128xf32>
    %c0_28 = arith.constant 0 : index
    %c0_29 = arith.constant 0 : index
    %112 = vector.load %arg2[%c0_28, %c0_29] : memref<16x128xf32, #tpu.memory_space<vmem>>, vector<16x128xf32>
    %113 = arith.addf %112, %111 : vector<16x128xf32>
    %c0_30 = arith.constant 0 : index
    %c0_31 = arith.constant 0 : index
    %114 = vector.load %arg3[%c0_30, %c0_31] : memref<16x128xf32, #tpu.memory_space<vmem>>, vector<16x128xf32>
    tpu.vector_store %arg3[%c0_30, %c0_31], %113 {strides = array<i32>} : memref<16x128xf32, #tpu.memory_space<vmem>>, vector<16x128xf32>,
    return
  }
  func.func @transform_0(%arg0: i32) -> i32 {
    %c0_i32 = arith.constant 0 : i32
    %c0_i32_0 = arith.constant 0 : i32
    return %c0_i32 : i32
  }
  func.func @transform_1(%arg0: i32) -> (i32, i32) {
    %c0_i32 = arith.constant 0 : i32
    %c0_i32_0 = arith.constant 0 : i32
    return %arg0, %c0_i32 : i32, i32
  }
  func.func @transform_2(%arg0: i32) -> (i32, i32) {
    %c0_i32 = arith.constant 0 : i32
    %c0_i32_0 = arith.constant 0 : i32
    return %arg0, %c0_i32 : i32, i32
  }
}

</mosaic_0001>

<llo_original>
// kernel: tpu_custom_call.1
$region0: #{tpu_custom_call.1}
  #allocation0 [shape = 'u32[]', space=smem, size = 0x4, offset = 0x4, fixed_abs, tag = 'smem constant byte address 0x4 - core index']
  #allocation1 [shape = 'u32[72,128]{1,0:T(1,128)}', space=vmem, size = 0x9000, scoped, tag = 'internal scratch']
  #allocation2 [shape = 's32[1]{0:T(128)S(6)}', space=smem, size = 0x200, scoped, tag = 'scoped memory for tpu_custom_call.1']
  %s0 = inlined_call_operand.<no memory space> [shape: s32[1], index: 0, kind: input, shape index: {}]
  %s1 = inlined_call_operand.hbm [shape: f32[16,128], index: 1, kind: input, shape index: {}]
  %s2 = inlined_call_operand.hbm [shape: f32[16,128], index: 2, kind: output, shape index: {}]
  %s3 = sld [smem:[#allocation0]]
  $region22: #{tpu_custom_call.1} parent=0
    _
  %s5 = ssub.s32 1, %s3
  %s6 = scalar_select 0, %s5, %s3
  %7 = sst [smem:[#allocation2]] %s0
  $region1: #{tpu_custom_call.1} parent=0
    #allocation3 [shape = 'u8[8192]{0}', space=vmem, size = 0x2000, scoped, tag = 'input window, operand 1, single buffered']
    #allocation4 [shape = 's32[1]{0}', space=sflag, size = 0x4, scoped, tag = 'scoped memory for tpu_custom_call.1']
    #allocation5 [shape = 's32[1]{0}', space=sflag, size = 0x4, scoped, tag = 'scoped memory for tpu_custom_call.1']
    #allocation6 [shape = 'u8[8192]{0}', space=vmem, size = 0x2000, scoped, tag = 'output window, operand 0, single buffered']
    %8 = vsyncpa [#allocation4], 0
    %9 = vsyncpa [#allocation5], 0
    // Predicated region
    $region2: #{tpu_custom_call.1} parent=1 // pred_check
      _
    $region3: #{tpu_custom_call.1} parent=1 // pred_check_branch
      %11 = sbr.rel (0) target = $region5
    $region4: #{tpu_custom_call.1} parent=1 // pred_region
      _
    $region5: #{tpu_custom_call.1} parent=1 // pred_fallthru
      _
    // Predicated region
    $region6: #{tpu_custom_call.1} parent=1 // pred_check
      _
    $region7: #{tpu_custom_call.1} parent=1 // pred_check_branch
      %13 = sbr.rel (0) target = $region9
    $region8: #{tpu_custom_call.1} parent=1 // pred_region
      %15 = vsyncadd [#allocation4], 0
      %s16 = sshll.u32 %s1, 4
      %s17 = int_to_ptr.hbm [resolvable:$true] %s16
      %s18 = sshll.u32 [#allocation3], 4
      %s19 = int_to_ptr.vmem [resolvable:$true] %s18
      %24 = dma.hbm_to_vmem [thread:$0]  %s17, 256, %s19, [#allocation4], 128, 128, 8
    $region9: #{tpu_custom_call.1} parent=1 // pred_fallthru
      _
    // Predicated region
    $region10: #{tpu_custom_call.1} parent=1 // pred_check
      _
    $region11: #{tpu_custom_call.1} parent=1 // pred_check_branch
      %26 = sbr.rel (0) target = $region13
    $region12: #{tpu_custom_call.1} parent=1 // pred_region
      %28 = dma.done [#allocation4], 256
    $region13: #{tpu_custom_call.1} parent=1 // pred_fallthru
      _
    %v29 = vlaneseq
    %v30 = vshrl.u32 %v29, 7
    %v31 = vadd.s32 %v30, 8
    %v32 = vlaneseq
    %v33 = vand.u32 %v32, 127
    %s34 = smul.u32 0, 16
    %v35 = vstv %s34
    %v36 = vadd.s32 %v35, %v30
    %v37 = vadd.s32 %v35, %v31
    %v38 = vmul.u32 %v36, 128
    %v39 = vmul.u32 %v37, 128
    %v40 = vadd.s32 %v38, %v33
    %v41 = vadd.s32 %v39, %v33
    %s42 = sld [smem:[#allocation2]]
    %v43 = vstv %s42
    %v44 = vxor.u32 %v40, %v43
    %v45 = vxor.u32 %v41, %v43
    %v46 = vshrl.u32 %v44, 17
    %v47 = vshrl.u32 %v45, 17
    %v48 = vxor.u32 %v44, %v46
    %v49 = vxor.u32 %v45, %v47
    %v50 = vmul.u32 %v48, 3982152891
    %v51 = vmul.u32 %v49, 3982152891
    %v52 = vshrl.u32 %v50, 11
    %v53 = vshrl.u32 %v51, 11
    %v54 = vxor.u32 %v50, %v52
    %v55 = vxor.u32 %v51, %v53
    %v56 = vmul.u32 %v54, 2890668881
    %v57 = vmul.u32 %v55, 2890668881
    %v58 = vshrl.u32 %v56, 15
    %v59 = vshrl.u32 %v57, 15
    %v60 = vxor.u32 %v56, %v58
    %v61 = vxor.u32 %v57, %v59
    %v62 = vmul.u32 %v60, 830770091
    %v63 = vmul.u32 %v61, 830770091
    %v64 = vshrl.u32 %v62, 14
    %v65 = vshrl.u32 %v63, 14
    %v66 = vxor.u32 %v62, %v64
    %v67 = vxor.u32 %v63, %v65
    %v68 = vshrl.u32 %v66, 9
    %v69 = vshrl.u32 %v67, 9
    %v70 = vor.u32 %v68, 1065353216
    %v71 = vor.u32 %v69, 1065353216
    %v74 = vmul.f32 %v70, 2.0
    %v75 = vmul.f32 %v71, 2.0
    %v76 = vsub.f32 %v74, 3.0
    %v77 = vsub.f32 %v75, 3.0
    %v78 = vsub.f32 1.0, %v76
    %v79 = vsub.f32 1.0, %v77
    %v80 = vadd.f32 %v76, 1.0
    %v81 = vadd.f32 %v77, 1.0
    %v82 = vmul.f32 %v78, %v80
    %v83 = vmul.f32 %v79, %v81
    %v84 = vlog2.pop %v82
    %v85 = vmul.f32 %v84, 0.6931472
    %v86 = vlog2.pop %v83
    %v87 = vmul.f32 %v86, 0.6931472
    %v88 = vsub.f32 0.0, %v85
    %v89 = vsub.f32 0.0, %v87
    %v90 = vsub.f32 %v88, 2.5
    %v91 = vsub.f32 %v89, 2.5
    %v92 = vmul.f32 %v90, 2.8102264e-08
    %v93 = vmul.f32 %v91, 2.8102264e-08
    %v94 = vadd.f32 %v92, 3.4327394e-07
    %v95 = vadd.f32 %v93, 3.4327394e-07
    %v96 = vmul.f32 %v94, %v90
    %v97 = vmul.f32 %v95, %v91
    %v98 = vadd.f32 %v96, -3.5233877e-06
    %v99 = vadd.f32 %v97, -3.5233877e-06
    %v100 = vmul.f32 %v98, %v90
    %v101 = vmul.f32 %v99, %v91
    %v102 = vadd.f32 %v100, -4.3915065e-06
    %v103 = vadd.f32 %v101, -4.3915065e-06
    %v104 = vmul.f32 %v102, %v90
    %v105 = vmul.f32 %v103, %v91
    %v106 = vadd.f32 %v104, 0.00021858087
    %v107 = vadd.f32 %v105, 0.00021858087
    %v108 = vmul.f32 %v106, %v90
    %v109 = vmul.f32 %v107, %v91
    %v110 = vadd.f32 %v108, -0.001253725
    %v111 = vadd.f32 %v109, -0.001253725
    %v112 = vmul.f32 %v110, %v90
    %v113 = vmul.f32 %v111, %v91
    %v114 = vadd.f32 %v112, -0.0041776816
    %v115 = vadd.f32 %v113, -0.0041776816
    %v116 = vmul.f32 %v114, %v90
    %v117 = vmul.f32 %v115, %v91
    %v118 = vadd.f32 %v116, 0.24664073
    %v119 = vadd.f32 %v117, 0.24664073
    %v120 = vmul.f32 %v118, %v90
    %v121 = vmul.f32 %v119, %v91
    %v122 = vadd.f32 %v120, 1.5014094
    %v123 = vadd.f32 %v121, 1.5014094
    %v124 = vrsqrt.pop %v88
    %v125 = vmul.f32 %v124, %v88
    %v126 = vmul.f32 %v125, %v124
    %v127 = vmul.f32 0.5, %v126
    %v128 = vsub.f32 1.5, %v127
    %v129 = vmul.f32 %v124, %v128
    %v130 = vmul.f32 %v88, %v129
    %vm131 = vcmp.eq.f32.partialorder %v88, inf
    %v132 = vsel %vm131, %v88, %v130
    %vm133 = vcmp.eq.f32.partialorder %v88, 0.0
    %v134 = vand.u32 %v88, 2147483648
    %v135 = vsel %vm133, %v134, %v132
    %v136 = vrsqrt.pop %v89
    %v137 = vmul.f32 %v136, %v89
    %v138 = vmul.f32 %v137, %v136
    %v139 = vmul.f32 0.5, %v138
    %v140 = vsub.f32 1.5, %v139
    %v141 = vmul.f32 %v136, %v140
    %v142 = vmul.f32 %v89, %v141
    %vm143 = vcmp.eq.f32.partialorder %v89, inf
    %v144 = vsel %vm143, %v89, %v142
    %vm145 = vcmp.eq.f32.partialorder %v89, 0.0
    %v146 = vand.u32 %v89, 2147483648
    %v147 = vsel %vm145, %v146, %v144
    %v148 = vsub.f32 %v135, 3.0
    %v149 = vsub.f32 %v147, 3.0
    %v150 = vmul.f32 %v148, -0.00020021426
    %v151 = vmul.f32 %v149, -0.00020021426
    %v152 = vadd.f32 %v150, 0.00010095056
    %v153 = vadd.f32 %v151, 0.00010095056
    %v154 = vmul.f32 %v152, %v148
    %v155 = vmul.f32 %v153, %v149
    %v156 = vadd.f32 %v154, 0.0013493432
    %v157 = vadd.f32 %v155, 0.0013493432
    %v158 = vmul.f32 %v156, %v148
    %v159 = vmul.f32 %v157, %v149
    %v160 = vadd.f32 %v158, -0.0036734284
    %v161 = vadd.f32 %v159, -0.0036734284
    %v162 = vmul.f32 %v160, %v148
    %v163 = vmul.f32 %v161, %v149
    %v164 = vadd.f32 %v162, 0.0057395077
    %v165 = vadd.f32 %v163, 0.0057395077
    %v166 = vmul.f32 %v164, %v148
    %v167 = vmul.f32 %v165, %v149
    %v168 = vadd.f32 %v166, -0.0076224613
    %v169 = vadd.f32 %v167, -0.0076224613
    %v170 = vmul.f32 %v168, %v148
    %v171 = vmul.f32 %v169, %v149
    %v172 = vadd.f32 %v170, 0.0094388705
    %v173 = vadd.f32 %v171, 0.0094388705
    %v174 = vmul.f32 %v172, %v148
    %v175 = vmul.f32 %v173, %v149
    %v176 = vadd.f32 %v174, 1.001674
    %v177 = vadd.f32 %v175, 1.001674
    %v178 = vmul.f32 %v176, %v148
    %v179 = vmul.f32 %v177, %v149
    %v180 = vadd.f32 %v178, 2.8329768
    %v181 = vadd.f32 %v179, 2.8329768
    %vm182 = vcmp.lt.f32.partialorder %v88, 5.0
    %vm183 = vcmp.lt.f32.partialorder %v89, 5.0
    %v184 = vsel %vm182, %v122, %v180
    %v185 = vsel %vm183, %v123, %v181
    %v186 = vmul.f32 %v184, %v76
    %v187 = vmul.f32 %v185, %v77
    %v188 = vmul.f32 %v186, 1.4142135
    %v189 = vmul.f32 %v187, 1.4142135
    %v190 = vmul.f32 %v188, 0.1
    %v191 = vmul.f32 %v189, 0.1
    %v192 = vadd.f32 %v190, 0.0
    %v193 = vadd.f32 %v191, 0.0
    %v194 = vld [vmem:[#allocation3] sm:$0xff]
    %v195 = vld [vmem:[#allocation3 + $0x8] sm:$0xff]
    %v196 = vadd.f32 %v194, %v192
    %v197 = vadd.f32 %v195, %v193
    %198 = vst [vmem:[#allocation6] sm:$0xff] %v196
    %199 = vst [vmem:[#allocation6 + $0x8] sm:$0xff] %v197
    // Predicated region
    $region14: #{tpu_custom_call.1} parent=1 // pred_check
      _
    $region15: #{tpu_custom_call.1} parent=1 // pred_check_branch
      %201 = sbr.rel (0) target = $region17
    $region16: #{tpu_custom_call.1} parent=1 // pred_region
      %203 = vsyncadd [#allocation5], 0
      %s204 = sshll.u32 [#allocation6], 4
      %s205 = int_to_ptr.vmem [resolvable:$true] %s204
      %s206 = sshll.u32 %s2, 4
      %s207 = int_to_ptr.hbm [resolvable:$true] %s206
      %212 = dma.vmem_to_hbm [thread:$0]  %s205, 256, %s207, [#allocation5], 128, 128, 8
    $region17: #{tpu_custom_call.1} parent=1 // pred_fallthru
      _
    // Predicated region
    $region18: #{tpu_custom_call.1} parent=1 // pred_check
      _
    $region19: #{tpu_custom_call.1} parent=1 // pred_check_branch
      %214 = sbr.rel (0) target = $region21
    $region20: #{tpu_custom_call.1} parent=1 // pred_region
      %216 = dma.done [#allocation5], 256
    $region21: #{tpu_custom_call.1} parent=1 // pred_fallthru
      _
    %217 = vsyncpa [#allocation4], 1
    %218 = vsyncpa [#allocation5], 1

</llo_original>
